<compile_context>
chip_gen: v7x
topology: tpu7x:2x2x1
jax: 0.10.0
libtpu: 0.0.40
codegen_flags: <defaults>
</compile_context>

<pallas_src>
import functools
import numpy as np
import jax
import jax.numpy as jnp
from jax.experimental import pallas as pl
from jax.experimental.pallas import tpu as pltpu


# ------------------------------------------------------------------ utilities
def _round_up(x, m):
    return (x + m - 1) // m * m


def _pick_tiles(size, unit, target):
    """Return (padded_size, tile): tile divides padded_size, tile % unit == 0."""
    p = _round_up(size, unit)
    if p <= target:
        return p, p                       # single tile, no over-padding
    t = max(unit, (target // unit) * unit)
    return _round_up(size, t), t


def _make_mm_kernel(relu, has_add):
    def kernel(*refs):
        if has_add:
            a_ref, b_ref, bias_ref, add_ref, o_ref = refs
        else:
            a_ref, b_ref, bias_ref, o_ref = refs
        acc = jnp.dot(a_ref[...], b_ref[...], preferred_element_type=jnp.float32)
        acc = acc + bias_ref[...]          # (tm,1) or (1,tn) broadcast
        if has_add:
            acc = acc + add_ref[...]
        if relu:
            acc = jnp.maximum(acc, 0.0)
        o_ref[...] = acc.astype(o_ref.dtype)
    return kernel


def pallas_matmul(a, b, bias=None, bias_axis=1, add=None, relu=False,
                  tm=256, tn=512, mm_dtype=jnp.bfloat16):
    """out = [relu](a @ b + bias + add).

    a:(M,K)  b:(K,N)  bias:(N,) if bias_axis==1 else (M,)  add:(M,N).
    MXU operands are cast to `mm_dtype` (bf16); bias/add/accumulate stay f32.
    K is a single full-extent block; M/N tiles adapt to the problem size.
    """
    M, K = a.shape
    K2, N = b.shape
    assert K == K2

    Mp, tmm = _pick_tiles(M, 16, tm)
    Np, tnn = _pick_tiles(N, 128, tn)
    Kp = _round_up(K, 128)

    def pad2(x, s0, s1):
        if x.shape == (s0, s1):
            return x
        return jnp.pad(x, ((0, s0 - x.shape[0]), (0, s1 - x.shape[1])))

    a_p = pad2(a.astype(mm_dtype), Mp, Kp)
    b_p = pad2(b.astype(mm_dtype), Kp, Np)

    if bias is None:
        bias_p = jnp.zeros((1, Np), jnp.float32)
        bias_spec = pl.BlockSpec((1, tnn), lambda i, j: (0, j))
    elif bias_axis == 1:                          # per output column
        bias_p = pad2(bias.astype(jnp.float32).reshape(1, N), 1, Np)
        bias_spec = pl.BlockSpec((1, tnn), lambda i, j: (0, j))
    else:                                         # per output row (channel-major conv)
        bias_p = pad2(bias.astype(jnp.float32).reshape(M, 1), Mp, 1)
        bias_spec = pl.BlockSpec((tmm, 1), lambda i, j: (i, 0))

    args = [a_p, b_p, bias_p]
    in_specs = [
        pl.BlockSpec((tmm, Kp), lambda i, j: (i, 0)),
        pl.BlockSpec((Kp, tnn), lambda i, j: (0, j)),
        bias_spec,
    ]
    has_add = add is not None
    if has_add:
        args.append(pad2(add.astype(jnp.float32), Mp, Np))
        in_specs.append(pl.BlockSpec((tmm, tnn), lambda i, j: (i, j)))

    out = pl.pallas_call(
        _make_mm_kernel(relu, has_add),
        out_shape=jax.ShapeDtypeStruct((Mp, Np), jnp.float32),
        grid_spec=pltpu.PrefetchScalarGridSpec(
            num_scalar_prefetch=0,
            grid=(Mp // tmm, Np // tnn),
            in_specs=in_specs,
            out_specs=pl.BlockSpec((tmm, tnn), lambda i, j: (i, j)),
        ),
        compiler_params=pltpu.CompilerParams(
            dimension_semantics=("parallel", "parallel")),
    )(*args)
    if (Mp, Np) != (M, N):
        out = out[:M, :N]
    return out


# ------------------------------------------- image layers, channel-major (C,B,H,W)
def conv3x3_cf(x, w_oihw, b, relu=False, add=None):
    """3x3 'same' conv, stride 1, PyTorch cross-correlation semantics.
    x:(C,B,H,W) -> (O,B,H,W).  out^T = Wmat(O,9C) @ cols(9C,B*H*W)."""
    C, B, H, W = x.shape
    O = w_oihw.shape[0]
    xp = jnp.pad(x, ((0, 0), (0, 0), (1, 1), (1, 1)))
    # TODO(synk): for very large H*W turn the 9 taps into an in-kernel reduction
    # grid axis instead of materializing the (9C, B*H*W) column matrix.
    cols = jnp.concatenate(
        [xp[:, :, dy:dy + H, dx:dx + W].reshape(C, B * H * W)
         for dy in range(3) for dx in range(3)], axis=0)            # tap-major
    wm = jnp.transpose(w_oihw, (0, 2, 3, 1)).reshape(O, 9 * C)      # [o, tap*C+c]
    add_flat = None if add is None else add.reshape(O, B * H * W)
    out = pallas_matmul(wm, cols, bias=b, bias_axis=0, add=add_flat, relu=relu)
    return out.reshape(O, B, H, W)


def conv1x1_cf(x, w_oi11, b, relu=False, add=None):
    C, B, H, W = x.shape
    O = w_oi11.shape[0]
    add_flat = None if add is None else add.reshape(O, B * H * W)
    out = pallas_matmul(w_oi11.reshape(O, C), x.reshape(C, B * H * W),
                        bias=b, bias_axis=0, add=add_flat, relu=relu)
    return out.reshape(O, B, H, W)


@functools.lru_cache(maxsize=None)
def _bilinear_matrix(n_in, n_out):
    """Interpolation matrix for bilinear upsample with align_corners=True."""
    R = np.zeros((n_out, n_in), np.float32)
    if n_in == 1:
        R[:, 0] = 1.0
        return jnp.asarray(R)
    for i in range(n_out):
        s = i * (n_in - 1) / (n_out - 1)
        i0 = int(np.floor(s))
        i1 = min(i0 + 1, n_in - 1)
        w = s - i0
        R[i, i0] += 1.0 - w
        R[i, i1] += w
    return jnp.asarray(R)


def upsample2x_cf(x):
    """nn.Upsample(scale_factor=2, mode='bilinear', align_corners=True),
    separable, done as two right-multiplications (contraction on the lane dim)."""
    C, B, H, W = x.shape
    Rw_T = _bilinear_matrix(W, 2 * W).T          # (W, 2W)
    Rh_T = _bilinear_matrix(H, 2 * H).T          # (H, 2H)
    y = pallas_matmul(x.reshape(C * B * H, W), Rw_T)        # (C*B*H, 2W)
    y = y.reshape(C, B, H, 2 * W).transpose(0, 1, 3, 2)     # (C,B,2W,H) small swap
    z = pallas_matmul(y.reshape(C * B * 2 * W, H), Rh_T)    # (C*B*2W, 2H)
    return z.reshape(C, B, 2 * W, 2 * H).transpose(0, 1, 3, 2)   # (C,B,2H,2W)


def residual_block_cf(x, p):
    # TODO(synk): residualBlock source was not provided; implementing a standard
    # conv3x3-ReLU-conv3x3 + (1x1-projection) skip with final ReLU, no norm.
    h = conv3x3_cf(x, p['w1'], p['b1'], relu=True)
    if 'ws' in p:
        skip = conv1x1_cf(x, p['ws'], p['bs'])
    else:
        skip = x
    return conv3x3_cf(h, p['w2'], p['b2'], relu=True, add=skip)


# --------------------------------------------------------------- graph layers
def graph_pool(x, U):
    """Pool()(x, U): out[b] = U @ x[b]  (dense stand-in for CoMA sparse U)."""
    B, Nin, F = x.shape
    Nout = U.shape[0]
    xt = x.transpose(1, 0, 2).reshape(Nin, B * F)
    y = pallas_matmul(U, xt)
    return y.reshape(Nout, B, F).transpose(1, 0, 2)


def cheb_conv(x, A_hat, W, bias, relu=False):
    """ChebConv_Coma forward: T_0=x, T_1=Ax, T_k=2A T_{k-1}-T_{k-2};
    out = sum_k T_k W_k (+bias).  A = D^-1/2 A D^-1/2 (no self loops)."""
    B, N, Fin = x.shape
    K, _, Fout = W.shape
    Na = A_hat.shape[0]
    if Na < N:
        # Faithful to the reference feeding the coarsest-level edge_index to the
        # last ChebConv: nodes >= Na receive no propagated contribution.
        A = jnp.zeros((N, N), jnp.float32).at[:Na, :Na].set(A_hat)
    else:
        A = A_hat

    def prop(t):
        tt = t.transpose(1, 0, 2).reshape(N, B * Fin)
        r = pallas_matmul(A, tt)
        return r.reshape(N, B, Fin).transpose(1, 0, 2)

    flat = lambda t: t.reshape(B * N, Fin)
    out = pallas_matmul(flat(x), W[0], bias=bias, relu=(relu and K == 1))
    Tx0, Tx1 = x, None
    for k in range(1, K):
        if k == 1:
            Tx1 = prop(x)
        else:
            Tx2 = 2.0 * prop(Tx1) - Tx0
            Tx0, Tx1 = Tx1, Tx2
        out = pallas_matmul(flat(Tx1), W[k], add=out, relu=(relu and k == K - 1))
    return out.reshape(B, N, Fout)


# ----------------------------------------------------------------- the model
class HybridDualPallas:
    def __init__(self, config, num_features, upsample_matrices, A_hats,
                 num_nodes, key, base_hw=32):
        self.n_layers = config['n_layers']
        self.filters = [num_features] + list(config['num_conv_filters'])
        self.K = config['polygon_order']
        self.z = config['z']
        self.is_variational = config['kld_weight'] != 0
        # TODO(synk): variational path (EncoderConv mu/log_var + sampling) not
        # exercised; config uses kld_weight=0 so the encoder returns z directly.
        self.upsample_matrices = upsample_matrices
        self.A_hat = A_hats
        self.num_nodes = num_nodes
        self.base_hw = base_hw   # reference DecoderConv uses 32 (-> 512x512 out)

        keys = iter(jax.random.split(key, 64))
        nrm = lambda shape, std: std * jax.random.normal(next(keys), shape, jnp.float32)

        # ---- graph decoder params
        n_coarse = upsample_matrices[-1].shape[1]
        self.dec_lin_w = nrm((self.filters[-1] * n_coarse, self.z), 0.1)
        self.dec_lin_b = nrm((self.filters[-1] * n_coarse,), 0.1)
        self.cheb_w, self.cheb_b = [], []
        for i in range(len(self.filters) - 1):
            fin, fout = self.filters[-i - 1], self.filters[-i - 2]
            self.cheb_w.append(nrm((self.K[i], fin, fout), 0.1))
            self.cheb_b.append(nrm((fout,), 0.1))
        self.cheb_b[-1] = None                       # self.cheb_dec[-1].bias = None

        # ---- DecoderConv params  (c=4 -> size = [8,16,32,64])
        c = 4
        size = [c * 2, c * 4, c * 8, c * 16]
        s = self.base_hw
        self.dc_fc_w = nrm((c * 16 * s * s, self.z), 1.0 / np.sqrt(self.z))
        self.dc_fc_b = nrm((c * 16 * s * s,), 0.01)

        def res_params(cin, cout):
            p = {'w1': nrm((cout, cin, 3, 3), 1.0 / np.sqrt(9 * cin)),
                 'b1': nrm((cout,), 0.01),
                 'w2': nrm((cout, cout, 3, 3), 1.0 / np.sqrt(9 * cout)),
                 'b2': nrm((cout,), 0.01)}
            if cin != cout:
                p['ws'] = nrm((cout, cin, 1, 1), 1.0 / np.sqrt(cin))
                p['bs'] = nrm((cout,), 0.01)
            return p

        self.up4 = res_params(size[3], size[3])
        self.up3 = res_params(size[3], size[2])
        self.up2 = res_params(size[2], size[1])
        self.up1 = res_params(size[1], size[0])
        self.last_w = nrm((4, size[0], 1, 1), 1.0 / np.sqrt(size[0]))
        self.last_b = nrm((4,), 0.01)

        # ---- EncoderConv params
        # TODO(synk): EncoderConv source was not provided; minimal conv encoder
        # with the same interface (NCHW image -> z latent).
        self.enc_w1 = nrm((8, 4, 3, 3), 1.0 / np.sqrt(9 * 4))
        self.enc_b1 = nrm((8,), 0.01)
        self.enc_w2 = nrm((16, 8, 3, 3), 1.0 / np.sqrt(9 * 8))
        self.enc_b2 = nrm((16,), 0.01)
        self.enc_fc_w = nrm((self.z, 16), 1.0 / np.sqrt(16))
        self.enc_fc_b = nrm((self.z,), 0.01)

    # ---------------- encoder (placeholder)
    def encoder(self, x_nchw):
        x = x_nchw.transpose(1, 0, 2, 3)                       # NCHW -> (C,B,H,W)
        x = conv3x3_cf(x, self.enc_w1, self.enc_b1, relu=True)
        C, B, H, W = x.shape
        x = x.reshape(C, B, H // 2, 2, W // 2, 2).mean(axis=(3, 5))
        x = conv3x3_cf(x, self.enc_w2, self.enc_b2, relu=True)
        C, B, H, W = x.shape
        x = x.reshape(C, B, H // 2, 2, W // 2, 2).mean(axis=(3, 5))
        x = x.mean(axis=(2, 3)).T                              # (B, C)
        return pallas_matmul(x, self.enc_fc_w.T, bias=self.enc_fc_b)

    # ---------------- graph (mesh) decoder
    def decoder(self, z):
        B = z.shape[0]
        x = pallas_matmul(z, self.dec_lin_w.T, bias=self.dec_lin_b, relu=True)
        x = x.reshape(B, -1, self.filters[-1])
        for i in range(self.n_layers):
            x = graph_pool(x, self.upsample_matrices[-i - 1])
            x = cheb_conv(x, self.A_hat[self.n_layers - i - 1],
                          self.cheb_w[i], self.cheb_b[i], relu=True)
        x = cheb_conv(x, self.A_hat[-1], self.cheb_w[-1], self.cheb_b[-1],
                      relu=False)
        return x

    # ---------------- image decoder (DecoderConv)
    def decoder_conv(self, z):
        B = z.shape[0]
        s = self.base_hw
        h = pallas_matmul(z, self.dc_fc_w.T, bias=self.dc_fc_b)      # (B, 64*s*s)
        x = h.reshape(B, 64, s, s).transpose(1, 0, 2, 3)             # (64, B, s, s)
        x = upsample2x_cf(x)
        x = residual_block_cf(x, self.up4)
        x = upsample2x_cf(x)
        x = residual_block_cf(x, self.up3)
        x = upsample2x_cf(x)
        x = residual_block_cf(x, self.up2)
        x = upsample2x_cf(x)
        x = residual_block_cf(x, self.up1)
        y = conv1x1_cf(x, self.last_w, self.last_b)                  # (4,B,16s,16s)
        return y.transpose(1, 0, 2, 3)                               # back to NCHW

    def __call__(self, x):
        z = self.encoder(x)              # non-variational (kld_weight == 0)
        return self.decoder(z), self.decoder_conv(z)


# --------------------------------------------------------------------- driver
def _ring_adj_norm(n):
    """ChebConv_Coma.norm for a ring graph: A_hat = D^-1/2 A D^-1/2."""
    A = np.zeros((n, n), np.float32)
    for i in range(n):
        A[i, (i + 1) % n] = 1.0
        A[(i + 1) % n, i] = 1.0
    dinv = 1.0 / np.sqrt(A.sum(1))
    return jnp.asarray(dinv[:, None] * A * dinv[None, :])


if __name__ == "__main__":
    config = {'n_layers': 2, 'num_conv_filters': [8, 16, 32],
              'polygon_order': [2, 2, 2], 'z': 8, 'kld_weight': 0}
    num_features = 3
    num_nodes = [48, 24, 12]                       # fine -> coarse mesh levels
    base_hw = 8                                    # small base (128x128 output)

    key = jax.random.PRNGKey(0)
    k_model, k_x, k_u0, k_u1 = jax.random.split(key, 4)

    # dense stand-ins for CoMA's sparse barycentric upsampling matrices
    U0 = jax.random.uniform(k_u0, (num_nodes[0], num_nodes[1]), jnp.float32)
    U0 = U0 / U0.sum(axis=1, keepdims=True)
    U1 = jax.random.uniform(k_u1, (num_nodes[1], num_nodes[2]), jnp.float32)
    U1 = U1 / U1.sum(axis=1, keepdims=True)
    A_hats = [_ring_adj_norm(n) for n in num_nodes]

    model = HybridDualPallas(config, num_features, [U0, U1], A_hats,
                             num_nodes, k_model, base_hw=base_hw)

    x = jax.random.normal(k_x, (2, 4, 16, 16), jnp.float32)   # NCHW encoder input
    mesh_out, img_out = model(x)
    jax.block_until_ready((mesh_out, img_out))

    assert mesh_out.shape == (2, num_nodes[0], num_features)
    assert img_out.shape == (2, 4, 16 * base_hw, 16 * base_hw)
    print("KERNEL_OK")
</pallas_src>

<mosaic_0001>
module attributes {stable_mosaic.version = 11 : i64} {
  func.func @kernel(%arg0: i32, %arg1: i32, %arg2: memref<16x128xbf16, #tpu.memory_space<vmem>>, %arg3: memref<128x512xbf16, #tpu.memory_space<vmem>>, %arg4: memref<16x1xf32, #tpu.memory_space<vmem>>, %arg5: memref<16x512xf32, #tpu.memory_space<vmem>>) attributes {dimension_semantics = [#tpu.dimension_semantics<parallel>, #tpu.dimension_semantics<parallel>], iteration_bounds = array<i64: 1, 1>, scalar_prefetch = 0 : i64, scratch_operands = 0 : i64, tpu.core_type = #tpu.core_type<tc>, window_params = [{transform_indices = @transform_0, window_bounds = array<i64: 16, 128>}, {transform_indices = @transform_1, window_bounds = array<i64: 128, 512>}, {transform_indices = @transform_2, window_bounds = array<i64: 16, 1>}, {transform_indices = @transform_3, window_bounds = array<i64: 16, 512>}]} {
    %c0 = arith.constant 0 : index
    %c0_0 = arith.constant 0 : index
    %0 = vector.load %arg2[%c0, %c0_0] : memref<16x128xbf16, #tpu.memory_space<vmem>>, vector<16x128xbf16>
    %c0_1 = arith.constant 0 : index
    %c0_2 = arith.constant 0 : index
    %1 = vector.load %arg3[%c0_1, %c0_2] : memref<128x512xbf16, #tpu.memory_space<vmem>>, vector<128x512xbf16>
    %cst = arith.constant dense<0.000000e+00> : vector<16x512xf32>
    %2 = tpu.matmul %0, %1, %cst {dimension_numbers = #tpu.dot_dimension_numbers<[1], [0], [0], [1], [0, 0, 1, 1], [], []>} : vector<16x128xbf16>, vector<128x512xbf16>, vector<16x512xf32> -> vector<16x512xf32>
    %c0_3 = arith.constant 0 : index
    %c0_4 = arith.constant 0 : index
    %3 = vector.load %arg4[%c0_3, %c0_4] : memref<16x1xf32, #tpu.memory_space<vmem>>, vector<16x1xf32>
    %4 = vector.broadcast %3 : vector<16x1xf32> to vector<16x512xf32>
    %5 = arith.addf %2, %4 : vector<16x512xf32>
    %cst_5 = arith.constant 0.000000e+00 : f32
    %6 = vector.broadcast %cst_5 : f32 to vector<16x512xf32>
    %7 = arith.maximumf %5, %6 : vector<16x512xf32>
    %c0_6 = arith.constant 0 : index
    %c0_7 = arith.constant 0 : index
    %8 = vector.load %arg5[%c0_6, %c0_7] : memref<16x512xf32, #tpu.memory_space<vmem>>, vector<16x512xf32>
    tpu.vector_store %arg5[%c0_6, %c0_7], %7 {strides = array<i32>} : memref<16x512xf32, #tpu.memory_space<vmem>>, vector<16x512xf32>,
    return
  }
  func.func @transform_0(%arg0: i32, %arg1: i32) -> (i32, i32) {
    %c0_i32 = arith.constant 0 : i32
    %c0_i32_0 = arith.constant 0 : i32
    return %arg0, %c0_i32 : i32, i32
  }
  func.func @transform_1(%arg0: i32, %arg1: i32) -> (i32, i32) {
    %c0_i32 = arith.constant 0 : i32
    %c0_i32_0 = arith.constant 0 : i32
    return %c0_i32, %arg1 : i32, i32
  }
  func.func @transform_2(%arg0: i32, %arg1: i32) -> (i32, i32) {
    %c0_i32 = arith.constant 0 : i32
    %c0_i32_0 = arith.constant 0 : i32
    return %arg0, %c0_i32 : i32, i32
  }
  func.func @transform_3(%arg0: i32, %arg1: i32) -> (i32, i32) {
    %c0_i32 = arith.constant 0 : i32
    return %arg0, %arg1 : i32, i32
  }
}

</mosaic_0001>

<llo_original>
// kernel: tpu_custom_call.1
$region0: #{tpu_custom_call.1}
  #allocation0 [shape = 'u32[]', space=smem, size = 0x4, offset = 0x4, fixed_abs, tag = 'smem constant byte address 0x4 - core index']
  #allocation1 [shape = 'u32[144,128]{1,0:T(1,128)}', space=vmem, size = 0x12000, scoped, tag = 'internal scratch']
  %s0 = inlined_call_operand.vmem [shape: bf16[16,128], index: 0, kind: input, shape index: {}]
  %s1 = inlined_call_operand.hbm [shape: bf16[128,512], index: 1, kind: input, shape index: {}]
  %s2 = inlined_call_operand.vmem [shape: f32[16,1], index: 2, kind: input, shape index: {}]
  %s3 = inlined_call_operand.hbm [shape: f32[16,512], index: 3, kind: output, shape index: {}]
  %s4 = sld [smem:[#allocation0]]
  $region26: #{tpu_custom_call.1} parent=0
    _
  %s6 = ssub.s32 1, %s4
  %s7 = scalar_select 0, %s6, %s4
  $region1: #{tpu_custom_call.1} parent=0
    #allocation2 [shape = 'u8[131072]{0}', space=vmem, size = 0x20000, scoped, tag = 'input window, operand 1, single buffered']
    #allocation3 [shape = 's32[1]{0}', space=sflag, size = 0x4, scoped, tag = 'scoped memory for tpu_custom_call.1']
    #allocation4 [shape = 's32[1]{0}', space=sflag, size = 0x4, scoped, tag = 'scoped memory for tpu_custom_call.1']
    #allocation5 [shape = 'u8[32768]{0}', space=vmem, size = 0x8000, scoped, tag = 'output window, operand 0, single buffered']
    %8 = vsyncpa [#allocation3], 0
    %9 = vsyncpa [#allocation4], 0
    // Predicated region
    $region2: #{tpu_custom_call.1} parent=1 // pred_check
      _
    $region3: #{tpu_custom_call.1} parent=1 // pred_check_branch
      %11 = sbr.rel (0) target = $region5
    $region4: #{tpu_custom_call.1} parent=1 // pred_region
      _
    $region5: #{tpu_custom_call.1} parent=1 // pred_fallthru
      _
    // Predicated region
    $region6: #{tpu_custom_call.1} parent=1 // pred_check
      _
    $region7: #{tpu_custom_call.1} parent=1 // pred_check_branch
      %13 = sbr.rel (0) target = $region9
    $region8: #{tpu_custom_call.1} parent=1 // pred_region
      %s15 = ssub.s32 4096, 4096
      %16 = vsyncadd [#allocation3], %s15
      %s17 = sshll.u32 [#allocation2], 4
      %s18 = int_to_ptr.vmem [resolvable:$true] %s17
      %23 = dma.hbm_to_vmem [thread:$0]  %s1, 4096, %s18, [#allocation3], 256, 256, 16
    $region9: #{tpu_custom_call.1} parent=1 // pred_fallthru
      _
    // Predicated region
    $region10: #{tpu_custom_call.1} parent=1 // pred_check
      _
    $region11: #{tpu_custom_call.1} parent=1 // pred_check_branch
      %25 = sbr.rel (0) target = $region13
    $region12: #{tpu_custom_call.1} parent=1 // pred_region
      _
    $region13: #{tpu_custom_call.1} parent=1 // pred_fallthru
      _
    // Predicated region
    $region14: #{tpu_custom_call.1} parent=1 // pred_check
      _
    $region15: #{tpu_custom_call.1} parent=1 // pred_check_branch
      %27 = sbr.rel (0) target = $region17
    $region16: #{tpu_custom_call.1} parent=1 // pred_region
      %28 = dma.done [#allocation3], 4096
    $region17: #{tpu_custom_call.1} parent=1 // pred_fallthru
      _
    %v30 = vld [vmem:[%s0] sm:$0xf]
    %v31 = vld [vmem:[%s0 + $0x4] sm:$0xf]
    %v32 = vld [vmem:[#allocation2] sm:$0xff]
    %v33 = vld [vmem:[#allocation2 + $0x8] sm:$0xff]
    %v34 = vld [vmem:[#allocation2 + $0x10] sm:$0xff]
    %v35 = vld [vmem:[#allocation2 + $0x18] sm:$0xff]
    %v36 = vld [vmem:[#allocation2 + $0x20] sm:$0xff]
    %v37 = vld [vmem:[#allocation2 + $0x28] sm:$0xff]
    %v38 = vld [vmem:[#allocation2 + $0x30] sm:$0xff]
    %v39 = vld [vmem:[#allocation2 + $0x38] sm:$0xff]
    %v40 = vld [vmem:[#allocation2 + $0x40] sm:$0xff]
    %v41 = vld [vmem:[#allocation2 + $0x48] sm:$0xff]
    %v42 = vld [vmem:[#allocation2 + $0x50] sm:$0xff]
    %v43 = vld [vmem:[#allocation2 + $0x58] sm:$0xff]
    %v44 = vld [vmem:[#allocation2 + $0x60] sm:$0xff]
    %v45 = vld [vmem:[#allocation2 + $0x68] sm:$0xff]
    %v46 = vld [vmem:[#allocation2 + $0x70] sm:$0xff]
    %v47 = vld [vmem:[#allocation2 + $0x78] sm:$0xff]
    %v48 = vld [vmem:[#allocation2 + $0x80] sm:$0xff]
    %v49 = vld [vmem:[#allocation2 + $0x88] sm:$0xff]
    %v50 = vld [vmem:[#allocation2 + $0x90] sm:$0xff]
    %v51 = vld [vmem:[#allocation2 + $0x98] sm:$0xff]
    %v52 = vld [vmem:[#allocation2 + $0xa0] sm:$0xff]
    %v53 = vld [vmem:[#allocation2 + $0xa8] sm:$0xff]
    %v54 = vld [vmem:[#allocation2 + $0xb0] sm:$0xff]
    %v55 = vld [vmem:[#allocation2 + $0xb8] sm:$0xff]
    %v56 = vld [vmem:[#allocation2 + $0xc0] sm:$0xff]
    %v57 = vld [vmem:[#allocation2 + $0xc8] sm:$0xff]
    %v58 = vld [vmem:[#allocation2 + $0xd0] sm:$0xff]
    %v59 = vld [vmem:[#allocation2 + $0xd8] sm:$0xff]
    %v60 = vld [vmem:[#allocation2 + $0xe0] sm:$0xff]
    %v61 = vld [vmem:[#allocation2 + $0xe8] sm:$0xff]
    %v62 = vld [vmem:[#allocation2 + $0xf0] sm:$0xff]
    %v63 = vld [vmem:[#allocation2 + $0xf8] sm:$0xff]
    %v64 = vld [vmem:[%s2] sm:$0xff]
    %v65 = vld [vmem:[%s2 + $0x8] sm:$0xff]
    %67 = vset.pattern.permute.xlu0 0
    %68 = vperm.xlu0 %67, %v64
    %v69 = vpop.permute.xlu0 %68
    %72 = vset.pattern.permute.xlu0 0
    %73 = vperm.xlu0 %72, %v65
    %v74 = vpop.permute.xlu0 %73
    %v78 = vunpack.c.l.b16 %v30
    %v79 = vunpack.c.l.b16 %v31
    %v80 = vpack.c.b16 %v79, %v78
    %v114 = vunpack.c.l.b16 %v32
    %v115 = vunpack.c.h.b16 %v32
    %v116 = vunpack.c.l.b16 %v33
    %v117 = vunpack.c.h.b16 %v33
    %v118 = vunpack.c.l.b16 %v34
    %v119 = vunpack.c.h.b16 %v34
    %v120 = vunpack.c.l.b16 %v35
    %v121 = vunpack.c.h.b16 %v35
    %v122 = vunpack.c.l.b16 %v36
    %v123 = vunpack.c.h.b16 %v36
    %v124 = vunpack.c.l.b16 %v37
    %v125 = vunpack.c.h.b16 %v37
    %v126 = vunpack.c.l.b16 %v38
    %v127 = vunpack.c.h.b16 %v38
    %v128 = vunpack.c.l.b16 %v39
    %v129 = vunpack.c.h.b16 %v39
    %v130 = vunpack.c.l.b16 %v40
    %v131 = vunpack.c.h.b16 %v40
    %v132 = vunpack.c.l.b16 %v41
    %v133 = vunpack.c.h.b16 %v41
    %v134 = vunpack.c.l.b16 %v42
    %v135 = vunpack.c.h.b16 %v42
    %v136 = vunpack.c.l.b16 %v43
    %v137 = vunpack.c.h.b16 %v43
    %v138 = vunpack.c.l.b16 %v44
    %v139 = vunpack.c.h.b16 %v44
    %v140 = vunpack.c.l.b16 %v45
    %v141 = vunpack.c.h.b16 %v45
    %v142 = vunpack.c.l.b16 %v46
    %v143 = vunpack.c.h.b16 %v46
    %v144 = vunpack.c.l.b16 %v47
    %v145 = vunpack.c.h.b16 %v47
    %v146 = vunpack.c.l.b16 %v48
    %v147 = vunpack.c.h.b16 %v48
    %v148 = vunpack.c.l.b16 %v49
    %v149 = vunpack.c.h.b16 %v49
    %v150 = vunpack.c.l.b16 %v50
    %v151 = vunpack.c.h.b16 %v50
    %v152 = vunpack.c.l.b16 %v51
    %v153 = vunpack.c.h.b16 %v51
    %v154 = vunpack.c.l.b16 %v52
    %v155 = vunpack.c.h.b16 %v52
    %v156 = vunpack.c.l.b16 %v53
    %v157 = vunpack.c.h.b16 %v53
    %v158 = vunpack.c.l.b16 %v54
    %v159 = vunpack.c.h.b16 %v54
    %v160 = vunpack.c.l.b16 %v55
    %v161 = vunpack.c.h.b16 %v55
    %v162 = vunpack.c.l.b16 %v56
    %v163 = vunpack.c.h.b16 %v56
    %v164 = vunpack.c.l.b16 %v57
    %v165 = vunpack.c.h.b16 %v57
    %v166 = vunpack.c.l.b16 %v58
    %v167 = vunpack.c.h.b16 %v58
    %v168 = vunpack.c.l.b16 %v59
    %v169 = vunpack.c.h.b16 %v59
    %v170 = vunpack.c.l.b16 %v60
    %v171 = vunpack.c.h.b16 %v60
    %v172 = vunpack.c.l.b16 %v61
    %v173 = vunpack.c.h.b16 %v61
    %v174 = vunpack.c.l.b16 %v62
    %v175 = vunpack.c.h.b16 %v62
    %v176 = vunpack.c.l.b16 %v63
    %v177 = vunpack.c.h.b16 %v63
    %v178 = vpack.c.b16 %v118, %v114
    %v179 = vpack.c.b16 %v119, %v115
    %v180 = vpack.c.b16 %v120, %v116
    %v181 = vpack.c.b16 %v121, %v117
    %v182 = vpack.c.b16 %v126, %v122
    %v183 = vpack.c.b16 %v127, %v123
    %v184 = vpack.c.b16 %v128, %v124
    %v185 = vpack.c.b16 %v129, %v125
    %v186 = vpack.c.b16 %v134, %v130
    %v187 = vpack.c.b16 %v135, %v131
    %v188 = vpack.c.b16 %v136, %v132
    %v189 = vpack.c.b16 %v137, %v133
    %v190 = vpack.c.b16 %v142, %v138
    %v191 = vpack.c.b16 %v143, %v139
    %v192 = vpack.c.b16 %v144, %v140
    %v193 = vpack.c.b16 %v145, %v141
    %v194 = vpack.c.b16 %v150, %v146
    %v195 = vpack.c.b16 %v151, %v147
    %v196 = vpack.c.b16 %v152, %v148
    %v197 = vpack.c.b16 %v153, %v149
    %v198 = vpack.c.b16 %v158, %v154
    %v199 = vpack.c.b16 %v159, %v155
    %v200 = vpack.c.b16 %v160, %v156
    %v201 = vpack.c.b16 %v161, %v157
    %v202 = vpack.c.b16 %v166, %v162
    %v203 = vpack.c.b16 %v167, %v163
    %v204 = vpack.c.b16 %v168, %v164
    %v205 = vpack.c.b16 %v169, %v165
    %v206 = vpack.c.b16 %v174, %v170
    %v207 = vpack.c.b16 %v175, %v171
    %v208 = vpack.c.b16 %v176, %v172
    %v209 = vpack.c.b16 %v177, %v173
    %242 = vmatprep.subr.bf16.mxu0 %v179
    %243 = vmatpush1.bf16.msra.mxu0 %v178
    %244 = vmatprep.subr.bf16.mxu0 %v183
    %245 = vmatpush1.bf16.msra.mxu0 %v182
    %246 = vmatprep.subr.bf16.mxu0 %v187
    %247 = vmatpush1.bf16.msra.mxu0 %v186
    %248 = vmatprep.subr.bf16.mxu0 %v191
    %249 = vmatpush1.bf16.msra.mxu0 %v190
    %250 = vmatprep.subr.bf16.mxu0 %v195
    %251 = vmatpush1.bf16.msra.mxu0 %v194
    %252 = vmatprep.subr.bf16.mxu0 %v199
    %253 = vmatpush1.bf16.msra.mxu0 %v198
    %254 = vmatprep.subr.bf16.mxu0 %v203
    %255 = vmatpush1.bf16.msra.mxu0 %v202
    %256 = vmatprep.subr.bf16.mxu0 %v207
    %257 = vmatpush1.bf16.msra.mxu0 %v206
    %258 = vmatprep.subr.bf16.mxu0 0
    %259 = vmatpush1.bf16.msra.mxu0 0
    %260 = vmatprep.subr.bf16.mxu0 0
    %261 = vmatpush1.bf16.msra.mxu0 0
    %262 = vmatprep.subr.bf16.mxu0 0
    %263 = vmatpush1.bf16.msra.mxu0 0
    %264 = vmatprep.subr.bf16.mxu0 0
    %265 = vmatpush1.bf16.msra.mxu0 0
    %266 = vmatprep.subr.bf16.mxu0 0
    %267 = vmatpush1.bf16.msra.mxu0 0
    %268 = vmatprep.subr.bf16.mxu0 0
    %269 = vmatpush1.bf16.msra.mxu0 0
    %270 = vmatprep.subr.bf16.mxu0 0
    %271 = vmatpush1.bf16.msra.mxu0 0
    %272 = vmatprep.subr.bf16.mxu0 0
    %273 = vmatpush1.bf16.msra.mxu0 0
    %274 = vmatprep.mubr.bf16.mxu0 0
    %275 = vmatmul.mubr.bf16.gmra.mrb[0].mxu0 %v80
    %v276 = vpop.f32.mrb[0].mxu0
    %v277 = vadd.f32 %v69, %v276
    %v278 = vpop.f32.mrb[0].mxu0
    %v279 = vadd.f32 %v69, %v278
    %v280 = vpop.f32.mrb[0].mxu0
    %v281 = vadd.f32 %v74, %v280
    %v282 = vpop.f32.mrb[0].mxu0
    %v283 = vadd.f32 %v74, %v282
    %284 = vdwg.mxu0
    %285 = vmatprep.subr.bf16.mxu0 %v181
    %286 = vmatpush1.bf16.msra.mxu0 %v180
    %287 = vmatprep.subr.bf16.mxu0 %v185
    %288 = vmatpush1.bf16.msra.mxu0 %v184
    %289 = vmatprep.subr.bf16.mxu0 %v189
    %290 = vmatpush1.bf16.msra.mxu0 %v188
    %291 = vmatprep.subr.bf16.mxu0 %v193
    %292 = vmatpush1.bf16.msra.mxu0 %v192
    %293 = vmatprep.subr.bf16.mxu0 %v197
    %294 = vmatpush1.bf16.msra.mxu0 %v196
    %295 = vmatprep.subr.bf16.mxu0 %v201
    %296 = vmatpush1.bf16.msra.mxu0 %v200
    %297 = vmatprep.subr.bf16.mxu0 %v205
    %298 = vmatpush1.bf16.msra.mxu0 %v204
    %299 = vmatprep.subr.bf16.mxu0 %v209
    %300 = vmatpush1.bf16.msra.mxu0 %v208
    %301 = vmatprep.subr.bf16.mxu0 0
    %302 = vmatpush1.bf16.msra.mxu0 0
    %303 = vmatprep.subr.bf16.mxu0 0
    %304 = vmatpush1.bf16.msra.mxu0 0
    %305 = vmatprep.subr.bf16.mxu0 0
    %306 = vmatpush1.bf16.msra.mxu0 0
    %307 = vmatprep.subr.bf16.mxu0 0
    %308 = vmatpush1.bf16.msra.mxu0 0
    %309 = vmatprep.subr.bf16.mxu0 0
    %310 = vmatpush1.bf16.msra.mxu0 0
    %311 = vmatprep.subr.bf16.mxu0 0
    %312 = vmatpush1.bf16.msra.mxu0 0
    %313 = vmatprep.subr.bf16.mxu0 0
    %314 = vmatpush1.bf16.msra.mxu0 0
    %315 = vmatprep.subr.bf16.mxu0 0
    %316 = vmatpush1.bf16.msra.mxu0 0
    %317 = vmatprep.mubr.bf16.mxu0 0
    %318 = vmatmul.mubr.bf16.gmra.mrb[0].mxu0 %v80
    %v319 = vpop.f32.mrb[0].mxu0
    %v320 = vadd.f32 %v69, %v319
    %v321 = vpop.f32.mrb[0].mxu0
    %v322 = vadd.f32 %v69, %v321
    %v323 = vpop.f32.mrb[0].mxu0
    %v324 = vadd.f32 %v74, %v323
    %v325 = vpop.f32.mrb[0].mxu0
    %v326 = vadd.f32 %v74, %v325
    %327 = vdwg.mxu0
    %v328 = vmax.f32 %v277, 0.0
    %v329 = vmax.f32 %v279, 0.0
    %v330 = vmax.f32 %v320, 0.0
    %v331 = vmax.f32 %v322, 0.0
    %v332 = vmax.f32 %v281, 0.0
    %v333 = vmax.f32 %v283, 0.0
    %v334 = vmax.f32 %v324, 0.0
    %v335 = vmax.f32 %v326, 0.0
    %336 = vst [vmem:[#allocation5] sm:$0xff] %v328
    %337 = vst [vmem:[#allocation5 + $0x8] sm:$0xff] %v329
    %338 = vst [vmem:[#allocation5 + $0x10] sm:$0xff] %v330
    %339 = vst [vmem:[#allocation5 + $0x18] sm:$0xff] %v331
    %340 = vst [vmem:[#allocation5 + $0x20] sm:$0xff] %v332
    %341 = vst [vmem:[#allocation5 + $0x28] sm:$0xff] %v333
    %342 = vst [vmem:[#allocation5 + $0x30] sm:$0xff] %v334
    %343 = vst [vmem:[#allocation5 + $0x38] sm:$0xff] %v335
    // Predicated region
    $region18: #{tpu_custom_call.1} parent=1 // pred_check
      _
    $region19: #{tpu_custom_call.1} parent=1 // pred_check_branch
      %345 = sbr.rel (0) target = $region21
    $region20: #{tpu_custom_call.1} parent=1 // pred_region
      %s347 = ssub.s32 1024, 1024
      %348 = vsyncadd [#allocation4], %s347
      %s349 = sshll.u32 [#allocation5], 4
      %s350 = int_to_ptr.vmem [resolvable:$true] %s349
      %355 = dma.vmem_to_hbm [thread:$0]  %s350, 1024, %s3, [#allocation4], 512, 512, 32
    $region21: #{tpu_custom_call.1} parent=1 // pred_fallthru
      _
    // Predicated region
    $region22: #{tpu_custom_call.1} parent=1 // pred_check
      _
    $region23: #{tpu_custom_call.1} parent=1 // pred_check_branch
      %357 = sbr.rel (0) target = $region25
    $region24: #{tpu_custom_call.1} parent=1 // pred_region
      %358 = dma.done [#allocation4], 1024
    $region25: #{tpu_custom_call.1} parent=1 // pred_fallthru
      _
    %359 = vsyncpa [#allocation3], 1
    %360 = vsyncpa [#allocation4], 1

</llo_original>
